<compile_context>
chip_gen: v7x
topology: tpu7x:2x2x1
jax: 0.10.0
libtpu: 0.0.40
codegen_flags: <defaults>
</compile_context>

<pallas_src>
import jax
import jax.numpy as jnp
from jax.experimental import pallas as pl
from jax.experimental.pallas import tpu as pltpu


def _round_up(x, m):
    return ((x + m - 1) // m) * m


def _num_tensorcores():
    # v7x has 2 TensorCores per chip; v5e/v6e have 1. Detection is best-effort.
    try:
        kind = (getattr(jax.devices()[0], "device_kind", "") or "").lower()
        if "v7" in kind:
            return 2
    except Exception:
        pass
    return 1


def _ddpg_actor_kernel(obs_ref, ids_ref,
                       wr_ref, br_ref,
                       w1s_ref, w1i_ref, b1_ref,
                       w2_ref, b2_ref,
                       w3_ref, b3_ref,
                       out_ref):
    # representation MLP: state = ReLU(obs @ Wr + br)   (bf16 x bf16 -> f32 acc)
    state = jnp.maximum(
        jnp.dot(obs_ref[...], wr_ref[...], preferred_element_type=jnp.float32)
        + br_ref[...],
        0.0,
    )
    # concat([state, ids]) @ W1 + b1 == state @ W1_state + ids @ W1_ids + b1
    # The K=n_agents ids matmul is tiny and done in f32 (exact) on the idle MXU slot.
    ids_part = jnp.dot(ids_ref[...], w1i_ref[...],
                       preferred_element_type=jnp.float32)
    h1 = jnp.maximum(
        jnp.dot(state.astype(jnp.bfloat16), w1s_ref[...],
                preferred_element_type=jnp.float32)
        + ids_part + b1_ref[...],
        0.0,
    )
    # h2 = ReLU(h1 @ W2 + b2)
    h2 = jnp.maximum(
        jnp.dot(h1.astype(jnp.bfloat16), w2_ref[...],
                preferred_element_type=jnp.float32)
        + b2_ref[...],
        0.0,
    )
    # action = tanh(h2 @ W3 + b3)   (narrow [TB, act_dim] store — no lane padding)
    act = jnp.tanh(
        jnp.dot(h2.astype(jnp.bfloat16), w3_ref[...],
                preferred_element_type=jnp.float32)
        + b3_ref[...]
    )
    out_ref[...] = act.astype(out_ref.dtype)


def ddpg_policy_forward(obs, agent_ids, params, *, tile_rows=2048, num_cores=None):
    """Forward pass of Independent_DDPG_Policy for one model key (parameter sharing)."""
    B, obs_dim = obs.shape
    n_agents = agent_ids.shape[-1]
    rep_dim = params["wr"].shape[1]
    hidden = params["w2"].shape[0]
    act_dim = params["w3"].shape[1]

    # bf16 weights for the big matmuls (native MXU, half the weight DMA);
    # biases and the tiny ids path stay f32.
    wr = params["wr"].astype(jnp.bfloat16)
    br = params["br"].astype(jnp.float32).reshape(1, rep_dim)
    w1s = params["w1_state"].astype(jnp.bfloat16)
    w1i = params["w1_ids"].astype(jnp.float32)
    b1 = params["b1"].astype(jnp.float32).reshape(1, hidden)
    w2 = params["w2"].astype(jnp.bfloat16)
    b2 = params["b2"].astype(jnp.float32).reshape(1, hidden)
    w3 = params["w3"].astype(jnp.bfloat16)
    b3 = params["b3"].astype(jnp.float32).reshape(1, act_dim)

    obs_bf = obs.astype(jnp.bfloat16)
    ids_f32 = agent_ids.astype(jnp.float32)

    # --- row-tile selection -------------------------------------------------
    # v7x: make sure there are >= 2 grid steps so ("parallel",) shards across
    # both TensorCores; v5e/v6e: keep the single largest tile (extra steps only
    # add ~0.35 us/step with no parallelism gain).
    if num_cores is None:
        num_cores = _num_tensorcores()
    n_steps = max(num_cores, pl.cdiv(B, tile_rows))
    TB = min(_round_up(B, 8), _round_up(pl.cdiv(B, n_steps), 8))
    grid = (pl.cdiv(B, TB),)
    # No wrapper-side jnp.pad: Pallas masks the ragged tail block (OOB input rows
    # are garbage but per-row independent, and their output stores are dropped).

    def row_spec(d):
        return pl.BlockSpec((TB, d), lambda i: (i, 0))

    def const_spec(arr):
        # Weights/biases: constant index_map -> DMA'd once, VMEM-resident.
        return pl.BlockSpec(arr.shape, lambda i: (0, 0))

    out = pl.pallas_call(
        _ddpg_actor_kernel,
        out_shape=jax.ShapeDtypeStruct((B, act_dim), jnp.float32),
        grid=grid,
        in_specs=[
            row_spec(obs_dim),        # obs tile (streamed / double-buffered)
            row_spec(n_agents),       # agent_ids tile (tiny)
            const_spec(wr), const_spec(br),
            const_spec(w1s), const_spec(w1i), const_spec(b1),
            const_spec(w2), const_spec(b2),
            const_spec(w3), const_spec(b3),
        ],
        out_specs=row_spec(act_dim),
        compiler_params=pltpu.CompilerParams(
            dimension_semantics=("parallel",),     # batch axis -> both TCs on v7x
            vmem_limit_bytes=32 * 1024 * 1024,     # v5e default is only 16 MiB
        ),
    )(obs_bf, ids_f32, wr, br, w1s, w1i, b1, w2, b2, w3, b3)

    return out


def _init_params(key, obs_dim, rep_dim, n_agents, hidden, act_dim):
    ks = jax.random.split(key, 8)
    scale = 0.1
    w1_full = scale * jax.random.normal(ks[2], (rep_dim + n_agents, hidden), jnp.float32)
    return dict(
        wr=scale * jax.random.normal(ks[0], (obs_dim, rep_dim), jnp.float32),
        br=scale * jax.random.normal(ks[1], (1, rep_dim), jnp.float32),
        w1_state=w1_full[:rep_dim],
        w1_ids=w1_full[rep_dim:],
        b1=scale * jax.random.normal(ks[3], (1, hidden), jnp.float32),
        w2=scale * jax.random.normal(ks[4], (hidden, hidden), jnp.float32),
        b2=scale * jax.random.normal(ks[5], (1, hidden), jnp.float32),
        w3=scale * jax.random.normal(ks[6], (hidden, act_dim), jnp.float32),
        b3=scale * jax.random.normal(ks[7], (1, act_dim), jnp.float32),
    )


def _reference(obs, agent_ids, p):
    state = jnp.maximum(obs @ p["wr"] + p["br"], 0.0)
    actor_in = jnp.concatenate([state, agent_ids], axis=-1)
    w1 = jnp.concatenate([p["w1_state"], p["w1_ids"]], axis=0)
    h1 = jnp.maximum(actor_in @ w1 + p["b1"], 0.0)
    h2 = jnp.maximum(h1 @ p["w2"] + p["b2"], 0.0)
    return jnp.tanh(h2 @ p["w3"] + p["b3"])


if __name__ == "__main__":
    # Small shapes consistent with the MARL forward:
    #   batch=4 env steps, n_agents=2 (parameter sharing -> rows = batch * n_agents)
    batch, n_agents = 4, 2
    obs_dim, rep_dim, hidden, act_dim = 16, 64, 64, 4
    B = batch * n_agents

    key = jax.random.PRNGKey(0)
    k_obs, k_par = jax.random.split(key)

    obs = jax.random.normal(k_obs, (B, obs_dim), jnp.float32)
    # one-hot agent ids, repeated per batch element (standard xuance agent_ids layout)
    agent_ids = jnp.tile(jnp.eye(n_agents, dtype=jnp.float32), (batch, 1))

    params = _init_params(k_par, obs_dim, rep_dim, n_agents, hidden, act_dim)

    actions = {"agent_0": ddpg_policy_forward(obs, agent_ids, params)}
    jax.block_until_ready(actions["agent_0"])

    ref = _reference(obs, agent_ids, params)
    assert actions["agent_0"].shape == (B, act_dim)
    # bf16 weights/activations inside the kernel -> loosened tolerance vs f32 reference
    assert jnp.allclose(actions["agent_0"], ref, atol=2e-2, rtol=0.0), (
        float(jnp.max(jnp.abs(actions["agent_0"] - ref))))

    print("KERNEL_OK")
</pallas_src>

<mosaic_0001>
module attributes {stable_mosaic.version = 11 : i64} {
  func.func @_ddpg_actor_kernel(%arg0: i32, %arg1: memref<8x16xbf16, #tpu.memory_space<vmem>>, %arg2: memref<8x2xf32, #tpu.memory_space<vmem>>, %arg3: memref<16x64xbf16, #tpu.memory_space<vmem>>, %arg4: memref<1x64xf32, #tpu.memory_space<vmem>>, %arg5: memref<64x64xbf16, #tpu.memory_space<vmem>>, %arg6: memref<2x64xf32, #tpu.memory_space<vmem>>, %arg7: memref<1x64xf32, #tpu.memory_space<vmem>>, %arg8: memref<64x64xbf16, #tpu.memory_space<vmem>>, %arg9: memref<1x64xf32, #tpu.memory_space<vmem>>, %arg10: memref<64x4xbf16, #tpu.memory_space<vmem>>, %arg11: memref<1x4xf32, #tpu.memory_space<vmem>>, %arg12: memref<8x4xf32, #tpu.memory_space<vmem>>) attributes {dimension_semantics = [#tpu.dimension_semantics<parallel>], iteration_bounds = array<i64: 1>, scalar_prefetch = 0 : i64, scratch_operands = 0 : i64, tpu.core_type = #tpu.core_type<tc>, window_params = [{transform_indices = @transform_0, window_bounds = array<i64: 8, 16>}, {transform_indices = @transform_1, window_bounds = array<i64: 8, 2>}, {pipeline_mode = #tpu.pipeline_mode<synchronous>, transform_indices = @transform_2, window_bounds = array<i64: 16, 64>}, {pipeline_mode = #tpu.pipeline_mode<synchronous>, transform_indices = @transform_3, window_bounds = array<i64: 1, 64>}, {pipeline_mode = #tpu.pipeline_mode<synchronous>, transform_indices = @transform_4, window_bounds = array<i64: 64, 64>}, {pipeline_mode = #tpu.pipeline_mode<synchronous>, transform_indices = @transform_5, window_bounds = array<i64: 2, 64>}, {pipeline_mode = #tpu.pipeline_mode<synchronous>, transform_indices = @transform_6, window_bounds = array<i64: 1, 64>}, {pipeline_mode = #tpu.pipeline_mode<synchronous>, transform_indices = @transform_7, window_bounds = array<i64: 64, 64>}, {pipeline_mode = #tpu.pipeline_mode<synchronous>, transform_indices = @transform_8, window_bounds = array<i64: 1, 64>}, {pipeline_mode = #tpu.pipeline_mode<synchronous>, transform_indices = @transform_9, window_bounds = array<i64: 64, 4>}, {pipeline_mode = #tpu.pipeline_mode<synchronous>, transform_indices = @transform_10, window_bounds = array<i64: 1, 4>}, {transform_indices = @transform_11, window_bounds = array<i64: 8, 4>}]} {
    %c0 = arith.constant 0 : index
    %c0_0 = arith.constant 0 : index
    %0 = vector.load %arg1[%c0, %c0_0] : memref<8x16xbf16, #tpu.memory_space<vmem>>, vector<8x16xbf16>
    %c0_1 = arith.constant 0 : index
    %c0_2 = arith.constant 0 : index
    %1 = vector.load %arg3[%c0_1, %c0_2] : memref<16x64xbf16, #tpu.memory_space<vmem>>, vector<16x64xbf16>
    %cst = arith.constant dense<0.000000e+00> : vector<8x64xf32>
    %2 = tpu.matmul %0, %1, %cst {dimension_numbers = #tpu.dot_dimension_numbers<[1], [0], [0], [1], [0, 0, 1, 1], [], []>} : vector<8x16xbf16>, vector<16x64xbf16>, vector<8x64xf32> -> vector<8x64xf32>
    %c0_3 = arith.constant 0 : index
    %c0_4 = arith.constant 0 : index
    %3 = vector.load %arg4[%c0_3, %c0_4] : memref<1x64xf32, #tpu.memory_space<vmem>>, vector<1x64xf32>
    %4 = vector.broadcast %3 : vector<1x64xf32> to vector<8x64xf32>
    %5 = arith.addf %2, %4 : vector<8x64xf32>
    %cst_5 = arith.constant 0.000000e+00 : f32
    %6 = vector.broadcast %cst_5 : f32 to vector<8x64xf32>
    %7 = arith.maximumf %5, %6 : vector<8x64xf32>
    %c0_6 = arith.constant 0 : index
    %c0_7 = arith.constant 0 : index
    %8 = vector.load %arg2[%c0_6, %c0_7] : memref<8x2xf32, #tpu.memory_space<vmem>>, vector<8x2xf32>
    %c0_8 = arith.constant 0 : index
    %c0_9 = arith.constant 0 : index
    %9 = vector.load %arg6[%c0_8, %c0_9] : memref<2x64xf32, #tpu.memory_space<vmem>>, vector<2x64xf32>
    %cst_10 = arith.constant dense<0.000000e+00> : vector<8x64xf32>
    %10 = tpu.matmul %8, %9, %cst_10 {dimension_numbers = #tpu.dot_dimension_numbers<[1], [0], [0], [1], [0, 0, 1, 1], [], []>} : vector<8x2xf32>, vector<2x64xf32>, vector<8x64xf32> -> vector<8x64xf32>
    %11 = arith.truncf %7 : vector<8x64xf32> to vector<8x64xbf16>
    %c0_11 = arith.constant 0 : index
    %c0_12 = arith.constant 0 : index
    %12 = vector.load %arg5[%c0_11, %c0_12] : memref<64x64xbf16, #tpu.memory_space<vmem>>, vector<64x64xbf16>
    %cst_13 = arith.constant dense<0.000000e+00> : vector<8x64xf32>
    %13 = tpu.matmul %11, %12, %cst_13 {dimension_numbers = #tpu.dot_dimension_numbers<[1], [0], [0], [1], [0, 0, 1, 1], [], []>} : vector<8x64xbf16>, vector<64x64xbf16>, vector<8x64xf32> -> vector<8x64xf32>
    %14 = arith.addf %13, %10 : vector<8x64xf32>
    %c0_14 = arith.constant 0 : index
    %c0_15 = arith.constant 0 : index
    %15 = vector.load %arg7[%c0_14, %c0_15] : memref<1x64xf32, #tpu.memory_space<vmem>>, vector<1x64xf32>
    %16 = vector.broadcast %15 : vector<1x64xf32> to vector<8x64xf32>
    %17 = arith.addf %14, %16 : vector<8x64xf32>
    %cst_16 = arith.constant 0.000000e+00 : f32
    %18 = vector.broadcast %cst_16 : f32 to vector<8x64xf32>
    %19 = arith.maximumf %17, %18 : vector<8x64xf32>
    %20 = arith.truncf %19 : vector<8x64xf32> to vector<8x64xbf16>
    %c0_17 = arith.constant 0 : index
    %c0_18 = arith.constant 0 : index
    %21 = vector.load %arg8[%c0_17, %c0_18] : memref<64x64xbf16, #tpu.memory_space<vmem>>, vector<64x64xbf16>
    %cst_19 = arith.constant dense<0.000000e+00> : vector<8x64xf32>
    %22 = tpu.matmul %20, %21, %cst_19 {dimension_numbers = #tpu.dot_dimension_numbers<[1], [0], [0], [1], [0, 0, 1, 1], [], []>} : vector<8x64xbf16>, vector<64x64xbf16>, vector<8x64xf32> -> vector<8x64xf32>
    %c0_20 = arith.constant 0 : index
    %c0_21 = arith.constant 0 : index
    %23 = vector.load %arg9[%c0_20, %c0_21] : memref<1x64xf32, #tpu.memory_space<vmem>>, vector<1x64xf32>
    %24 = vector.broadcast %23 : vector<1x64xf32> to vector<8x64xf32>
    %25 = arith.addf %22, %24 : vector<8x64xf32>
    %cst_22 = arith.constant 0.000000e+00 : f32
    %26 = vector.broadcast %cst_22 : f32 to vector<8x64xf32>
    %27 = arith.maximumf %25, %26 : vector<8x64xf32>
    %28 = arith.truncf %27 : vector<8x64xf32> to vector<8x64xbf16>
    %c0_23 = arith.constant 0 : index
    %c0_24 = arith.constant 0 : index
    %29 = vector.load %arg10[%c0_23, %c0_24] : memref<64x4xbf16, #tpu.memory_space<vmem>>, vector<64x4xbf16>
    %cst_25 = arith.constant dense<0.000000e+00> : vector<8x4xf32>
    %30 = tpu.matmul %28, %29, %cst_25 {dimension_numbers = #tpu.dot_dimension_numbers<[1], [0], [0], [1], [0, 0, 1, 1], [], []>} : vector<8x64xbf16>, vector<64x4xbf16>, vector<8x4xf32> -> vector<8x4xf32>
    %c0_26 = arith.constant 0 : index
    %c0_27 = arith.constant 0 : index
    %31 = vector.load %arg11[%c0_26, %c0_27] : memref<1x4xf32, #tpu.memory_space<vmem>>, vector<1x4xf32>
    %32 = vector.broadcast %31 : vector<1x4xf32> to vector<8x4xf32>
    %33 = arith.addf %30, %32 : vector<8x4xf32>
    %34 = math.tanh %33 : vector<8x4xf32>
    %c0_28 = arith.constant 0 : index
    %c0_29 = arith.constant 0 : index
    %35 = vector.load %arg12[%c0_28, %c0_29] : memref<8x4xf32, #tpu.memory_space<vmem>>, vector<8x4xf32>
    tpu.vector_store %arg12[%c0_28, %c0_29], %34 {strides = array<i32>} : memref<8x4xf32, #tpu.memory_space<vmem>>, vector<8x4xf32>,
    return
  }
  func.func @transform_0(%arg0: i32) -> (i32, i32) {
    %c0_i32 = arith.constant 0 : i32
    %c0_i32_0 = arith.constant 0 : i32
    return %arg0, %c0_i32 : i32, i32
  }
  func.func @transform_1(%arg0: i32) -> (i32, i32) {
    %c0_i32 = arith.constant 0 : i32
    %c0_i32_0 = arith.constant 0 : i32
    return %arg0, %c0_i32 : i32, i32
  }
  func.func @transform_2(%arg0: i32) -> (i32, i32) {
    %c0_i32 = arith.constant 0 : i32
    %c0_i32_0 = arith.constant 0 : i32
    %c0_i32_1 = arith.constant 0 : i32
    return %c0_i32, %c0_i32_0 : i32, i32
  }
  func.func @transform_3(%arg0: i32) -> (i32, i32) {
    %c0_i32 = arith.constant 0 : i32
    %c0_i32_0 = arith.constant 0 : i32
    %c0_i32_1 = arith.constant 0 : i32
    return %c0_i32, %c0_i32_0 : i32, i32
  }
  func.func @transform_4(%arg0: i32) -> (i32, i32) {
    %c0_i32 = arith.constant 0 : i32
    %c0_i32_0 = arith.constant 0 : i32
    %c0_i32_1 = arith.constant 0 : i32
    return %c0_i32, %c0_i32_0 : i32, i32
  }
  func.func @transform_5(%arg0: i32) -> (i32, i32) {
    %c0_i32 = arith.constant 0 : i32
    %c0_i32_0 = arith.constant 0 : i32
    %c0_i32_1 = arith.constant 0 : i32
    return %c0_i32, %c0_i32_0 : i32, i32
  }
  func.func @transform_6(%arg0: i32) -> (i32, i32) {
    %c0_i32 = arith.constant 0 : i32
    %c0_i32_0 = arith.constant 0 : i32
    %c0_i32_1 = arith.constant 0 : i32
    return %c0_i32, %c0_i32_0 : i32, i32
  }
  func.func @transform_7(%arg0: i32) -> (i32, i32) {
    %c0_i32 = arith.constant 0 : i32
    %c0_i32_0 = arith.constant 0 : i32
    %c0_i32_1 = arith.constant 0 : i32
    return %c0_i32, %c0_i32_0 : i32, i32
  }
  func.func @transform_8(%arg0: i32) -> (i32, i32) {
    %c0_i32 = arith.constant 0 : i32
    %c0_i32_0 = arith.constant 0 : i32
    %c0_i32_1 = arith.constant 0 : i32
    return %c0_i32, %c0_i32_0 : i32, i32
  }
  func.func @transform_9(%arg0: i32) -> (i32, i32) {
    %c0_i32 = arith.constant 0 : i32
    %c0_i32_0 = arith.constant 0 : i32
    %c0_i32_1 = arith.constant 0 : i32
    return %c0_i32, %c0_i32_0 : i32, i32
  }
  func.func @transform_10(%arg0: i32) -> (i32, i32) {
    %c0_i32 = arith.constant 0 : i32
    %c0_i32_0 = arith.constant 0 : i32
    %c0_i32_1 = arith.constant 0 : i32
    return %c0_i32, %c0_i32_0 : i32, i32
  }
  func.func @transform_11(%arg0: i32) -> (i32, i32) {
    %c0_i32 = arith.constant 0 : i32
    %c0_i32_0 = arith.constant 0 : i32
    return %arg0, %c0_i32 : i32, i32
  }
}

</mosaic_0001>

<llo_original>
// kernel: tpu_custom_call.1
$region0: #{tpu_custom_call.1}
  #allocation0 [shape = 'u32[]', space=smem, size = 0x4, offset = 0x4, fixed_abs, tag = 'smem constant byte address 0x4 - core index']
  #allocation1 [shape = 'u32[144,128]{1,0:T(1,128)}', space=vmem, size = 0x12000, scoped, tag = 'internal scratch']
  %s0 = inlined_call_operand.hbm [shape: bf16[8,16], index: 0, kind: input, shape index: {}]
  %s1 = inlined_call_operand.vmem [shape: f32[8,2], index: 1, kind: input, shape index: {}]
  %s2 = inlined_call_operand.hbm [shape: bf16[16,64], index: 2, kind: input, shape index: {}]
  %s3 = inlined_call_operand.hbm [shape: f32[1,64], index: 3, kind: input, shape index: {}]
  %s4 = inlined_call_operand.vmem [shape: bf16[64,64], index: 4, kind: input, shape index: {}]
  %s5 = inlined_call_operand.vmem [shape: f32[2,64], index: 5, kind: input, shape index: {}]
  %s6 = inlined_call_operand.hbm [shape: f32[1,64], index: 6, kind: input, shape index: {}]
  %s7 = inlined_call_operand.vmem [shape: bf16[64,64], index: 7, kind: input, shape index: {}]
  %s8 = inlined_call_operand.vmem [shape: f32[1,64], index: 8, kind: input, shape index: {}]
  %s9 = inlined_call_operand.vmem [shape: bf16[64,4], index: 9, kind: input, shape index: {}]
  %s10 = inlined_call_operand.vmem [shape: f32[1,4], index: 10, kind: input, shape index: {}]
  %s11 = inlined_call_operand.vmem [shape: f32[8,4], index: 11, kind: output, shape index: {}]
  %s12 = sld [smem:[#allocation0]]
  $region70: #{tpu_custom_call.1} parent=0
    _
  %s14 = ssub.s32 1, %s12
  %s15 = scalar_select 0, %s14, %s12
  $region1: #{tpu_custom_call.1} parent=0
    #allocation2 [shape = 'u8[2048]{0}', space=vmem, size = 0x800, scoped, tag = 'input window, operand 0, single buffered']
    #allocation3 [shape = 's32[1]{0}', space=sflag, size = 0x4, scoped, tag = 'scoped memory for tpu_custom_call.1']
    #allocation4 [shape = 'u8[4096]{0}', space=vmem, size = 0x1000, scoped, tag = 'input window, operand 2, single buffered']
    #allocation5 [shape = 's32[1]{0}', space=sflag, size = 0x4, scoped, tag = 'scoped memory for tpu_custom_call.1']
    #allocation6 [shape = 'u8[512]{0}', space=vmem, size = 0x400, scoped, tag = 'input window, operand 3, single buffered']
    #allocation7 [shape = 'u8[512]{0}', space=vmem, size = 0x400, scoped, tag = 'input window, operand 6, single buffered']
    #allocation8 [shape = 's32[1]{0}', space=sflag, size = 0x4, scoped, tag = 'scoped memory for tpu_custom_call.1']
    %16 = vsyncpa [#allocation3], 0
    %17 = vsyncpa [#allocation5], 0
    %18 = vsyncpa [#allocation8], 0
    // Predicated region
    $region2: #{tpu_custom_call.1} parent=1 // pred_check
      _
    $region3: #{tpu_custom_call.1} parent=1 // pred_check_branch
      %20 = sbr.rel (0) target = $region5
    $region4: #{tpu_custom_call.1} parent=1 // pred_region
      %s22 = ssub.s32 64, 64
      %23 = vsyncadd [#allocation3], %s22
      %s25 = sshll.u32 [#allocation2], 4
      %s26 = int_to_ptr.vmem [resolvable:$true] %s25
      %28 = dma.hbm_to_vmem [thread:$0]  %s0, 64, %s26, [#allocation3]
    $region5: #{tpu_custom_call.1} parent=1 // pred_fallthru
      _
    // Predicated region
    $region6: #{tpu_custom_call.1} parent=1 // pred_check
      _
    $region7: #{tpu_custom_call.1} parent=1 // pred_check_branch
      %30 = sbr.rel (0) target = $region9
    $region8: #{tpu_custom_call.1} parent=1 // pred_region
      _
    $region9: #{tpu_custom_call.1} parent=1 // pred_fallthru
      _
    // Predicated region
    $region10: #{tpu_custom_call.1} parent=1 // pred_check
      _
    $region11: #{tpu_custom_call.1} parent=1 // pred_check_branch
      %32 = sbr.rel (0) target = $region13
    $region12: #{tpu_custom_call.1} parent=1 // pred_region
      %s34 = ssub.s32 128, 128
      %35 = vsyncadd [#allocation5], %s34
      %s36 = sshll.u32 [#allocation4], 4
      %s37 = int_to_ptr.vmem [resolvable:$true] %s36
      %42 = dma.hbm_to_vmem [thread:$0]  %s2, 128, %s37, [#allocation5], 64, 64, 4
    $region13: #{tpu_custom_call.1} parent=1 // pred_fallthru
      _
    // Predicated region
    $region14: #{tpu_custom_call.1} parent=1 // pred_check
      _
    $region15: #{tpu_custom_call.1} parent=1 // pred_check_branch
      %44 = sbr.rel (0) target = $region17
    $region16: #{tpu_custom_call.1} parent=1 // pred_region
      %s46 = ssub.s32 16, 16
      %47 = vsyncadd [#allocation5], %s46
      %s49 = sshll.u32 [#allocation6], 4
      %s50 = int_to_ptr.vmem [resolvable:$true] %s49
      %52 = dma.hbm_to_vmem [thread:$0]  %s3, 16, %s50, [#allocation5]
    $region17: #{tpu_custom_call.1} parent=1 // pred_fallthru
      _
    // Predicated region
    $region18: #{tpu_custom_call.1} parent=1 // pred_check
      _
    $region19: #{tpu_custom_call.1} parent=1 // pred_check_branch
      %54 = sbr.rel (0) target = $region21
    $region20: #{tpu_custom_call.1} parent=1 // pred_region
      _
    $region21: #{tpu_custom_call.1} parent=1 // pred_fallthru
      _
    // Predicated region
    $region22: #{tpu_custom_call.1} parent=1 // pred_check
      _
    $region23: #{tpu_custom_call.1} parent=1 // pred_check_branch
      %56 = sbr.rel (0) target = $region25
    $region24: #{tpu_custom_call.1} parent=1 // pred_region
      _
    $region25: #{tpu_custom_call.1} parent=1 // pred_fallthru
      _
    // Predicated region
    $region26: #{tpu_custom_call.1} parent=1 // pred_check
      _
    $region27: #{tpu_custom_call.1} parent=1 // pred_check_branch
      %58 = sbr.rel (0) target = $region29
    $region28: #{tpu_custom_call.1} parent=1 // pred_region
      %s60 = ssub.s32 16, 16
      %61 = vsyncadd [#allocation8], %s60
      %s63 = sshll.u32 [#allocation7], 4
      %s64 = int_to_ptr.vmem [resolvable:$true] %s63
      %66 = dma.hbm_to_vmem [thread:$0]  %s6, 16, %s64, [#allocation8]
    $region29: #{tpu_custom_call.1} parent=1 // pred_fallthru
      _
    // Predicated region
    $region30: #{tpu_custom_call.1} parent=1 // pred_check
      _
    $region31: #{tpu_custom_call.1} parent=1 // pred_check_branch
      %68 = sbr.rel (0) target = $region33
    $region32: #{tpu_custom_call.1} parent=1 // pred_region
      _
    $region33: #{tpu_custom_call.1} parent=1 // pred_fallthru
      _
    // Predicated region
    $region34: #{tpu_custom_call.1} parent=1 // pred_check
      _
    $region35: #{tpu_custom_call.1} parent=1 // pred_check_branch
      %70 = sbr.rel (0) target = $region37
    $region36: #{tpu_custom_call.1} parent=1 // pred_region
      _
    $region37: #{tpu_custom_call.1} parent=1 // pred_fallthru
      _
    // Predicated region
    $region38: #{tpu_custom_call.1} parent=1 // pred_check
      _
    $region39: #{tpu_custom_call.1} parent=1 // pred_check_branch
      %72 = sbr.rel (0) target = $region41
    $region40: #{tpu_custom_call.1} parent=1 // pred_region
      _
    $region41: #{tpu_custom_call.1} parent=1 // pred_fallthru
      _
    // Predicated region
    $region42: #{tpu_custom_call.1} parent=1 // pred_check
      _
    $region43: #{tpu_custom_call.1} parent=1 // pred_check_branch
      %74 = sbr.rel (0) target = $region45
    $region44: #{tpu_custom_call.1} parent=1 // pred_region
      _
    $region45: #{tpu_custom_call.1} parent=1 // pred_fallthru
      _
    // Predicated region
    $region46: #{tpu_custom_call.1} parent=1 // pred_check
      _
    $region47: #{tpu_custom_call.1} parent=1 // pred_check_branch
      %76 = sbr.rel (0) target = $region49
    $region48: #{tpu_custom_call.1} parent=1 // pred_region
      %77 = dma.done [#allocation3], 64
    $region49: #{tpu_custom_call.1} parent=1 // pred_fallthru
      _
    // Predicated region
    $region50: #{tpu_custom_call.1} parent=1 // pred_check
      _
    $region51: #{tpu_custom_call.1} parent=1 // pred_check_branch
      %79 = sbr.rel (0) target = $region53
    $region52: #{tpu_custom_call.1} parent=1 // pred_region
      %80 = dma.done [#allocation5], 128
    $region53: #{tpu_custom_call.1} parent=1 // pred_fallthru
      _
    // Predicated region
    $region54: #{tpu_custom_call.1} parent=1 // pred_check
      _
    $region55: #{tpu_custom_call.1} parent=1 // pred_check_branch
      %82 = sbr.rel (0) target = $region57
    $region56: #{tpu_custom_call.1} parent=1 // pred_region
      %83 = dma.done [#allocation5], 16
    $region57: #{tpu_custom_call.1} parent=1 // pred_fallthru
      _
    // Predicated region
    $region58: #{tpu_custom_call.1} parent=1 // pred_check
      _
    $region59: #{tpu_custom_call.1} parent=1 // pred_check_branch
      %85 = sbr.rel (0) target = $region61
    $region60: #{tpu_custom_call.1} parent=1 // pred_region
      %86 = dma.done [#allocation8], 16
    $region61: #{tpu_custom_call.1} parent=1 // pred_fallthru
      _
    %v88 = vld [vmem:[#allocation2] sm:$0xf]
    %v89 = vld [vmem:[#allocation4] sm:$0xf]
    %v90 = vld [vmem:[#allocation4 + $0x4] sm:$0xf]
    %v91 = vld [vmem:[#allocation6] sm:$0x1]
    %v93 = vlaneseq
    %v94 = vshrl.u32 %v93, 7
    %v95 = vsub.s32 0, %v94
    %v96 = vrot.slane %v91, %v95
    %v100 = vunpack.c.l.b16 %v89
    %v101 = vunpack.c.l.b16 %v90
    %v102 = vpack.c.b16 %v101, %v100
    %vm104 = vcmask 130048
    %v106 = vsel %vm104, %v88, 0
    %108 = vmatprep.subr.bf16.mxu0 0
    %109 = vmatpush1.bf16.msra.mxu0 %v102
    %110 = vmatprep.subr.bf16.mxu0 0
    %111 = vmatpush1.bf16.msra.mxu0 0
    %112 = vmatprep.subr.bf16.mxu0 0
    %113 = vmatpush1.bf16.msra.mxu0 0
    %114 = vmatprep.subr.bf16.mxu0 0
    %115 = vmatpush1.bf16.msra.mxu0 0
    %116 = vmatprep.subr.bf16.mxu0 0
    %117 = vmatpush1.bf16.msra.mxu0 0
    %118 = vmatprep.subr.bf16.mxu0 0
    %119 = vmatpush1.bf16.msra.mxu0 0
    %120 = vmatprep.subr.bf16.mxu0 0
    %121 = vmatpush1.bf16.msra.mxu0 0
    %122 = vmatprep.subr.bf16.mxu0 0
    %123 = vmatpush1.bf16.msra.mxu0 0
    %124 = vmatprep.subr.bf16.mxu0 0
    %125 = vmatpush1.bf16.msra.mxu0 0
    %126 = vmatprep.subr.bf16.mxu0 0
    %127 = vmatpush1.bf16.msra.mxu0 0
    %128 = vmatprep.subr.bf16.mxu0 0
    %129 = vmatpush1.bf16.msra.mxu0 0
    %130 = vmatprep.subr.bf16.mxu0 0
    %131 = vmatpush1.bf16.msra.mxu0 0
    %132 = vmatprep.subr.bf16.mxu0 0
    %133 = vmatpush1.bf16.msra.mxu0 0
    %134 = vmatprep.subr.bf16.mxu0 0
    %135 = vmatpush1.bf16.msra.mxu0 0
    %136 = vmatprep.subr.bf16.mxu0 0
    %137 = vmatpush1.bf16.msra.mxu0 0
    %138 = vmatprep.subr.bf16.mxu0 0
    %139 = vmatpush1.bf16.msra.mxu0 0
    %140 = vmatprep.mubr.bf16.mxu0 0
    %141 = vmatmul.mubr.bf16.gmra.mrb[0].mxu0 %v106
    %v142 = vpop.f32.mrb[0].mxu0
    %v143 = vadd.f32 %v96, %v142
    %v144 = vpop.f32.mrb[0].mxu0
    %v145 = vpop.f32.mrb[0].mxu0
    %v146 = vpop.f32.mrb[0].mxu0
    %147 = vdwg.mxu0
    %v148 = vmax.f32 %v143, 0.0
    %v149 = vld [vmem:[%s1] sm:$0xff]
    %v150 = vld [vmem:[%s5] sm:$0x3]
    %vm151 = vcmask 15360
    %v153 = vsel %vm151, %v149, 0
    %vm155 = vcmask 1041408
    %v157 = vsel %vm155, %v150, 0
    %159 = vmatprep.subr.mxu0 0.0
    %160 = vmatpush1.msra.mxu0 %v157
    %161 = vmatprep.subr.mxu0 0.0
    %162 = vmatpush1.msra.mxu0 0.0
    %163 = vmatprep.subr.mxu0 0.0
    %164 = vmatpush1.msra.mxu0 0.0
    %165 = vmatprep.subr.mxu0 0.0
    %166 = vmatpush1.msra.mxu0 0.0
    %167 = vmatprep.subr.mxu0 0.0
    %168 = vmatpush1.msra.mxu0 0.0
    %169 = vmatprep.subr.mxu0 0.0
    %170 = vmatpush1.msra.mxu0 0.0
    %171 = vmatprep.subr.mxu0 0.0
    %172 = vmatpush1.msra.mxu0 0.0
    %173 = vmatprep.subr.mxu0 0.0
    %174 = vmatpush1.msra.mxu0 0.0
    %175 = vmatprep.subr.mxu0 0.0
    %176 = vmatpush1.msra.mxu0 0.0
    %177 = vmatprep.subr.mxu0 0.0
    %178 = vmatpush1.msra.mxu0 0.0
    %179 = vmatprep.subr.mxu0 0.0
    %180 = vmatpush1.msra.mxu0 0.0
    %181 = vmatprep.subr.mxu0 0.0
    %182 = vmatpush1.msra.mxu0 0.0
    %183 = vmatprep.subr.mxu0 0.0
    %184 = vmatpush1.msra.mxu0 0.0
    %185 = vmatprep.subr.mxu0 0.0
    %186 = vmatpush1.msra.mxu0 0.0
    %187 = vmatprep.subr.mxu0 0.0
    %188 = vmatpush1.msra.mxu0 0.0
    %189 = vmatprep.subr.mxu0 0.0
    %190 = vmatpush1.msra.mxu0 0.0
    %191 = vmatprep.subr.mxu0 0.0
    %192 = vmatpush1.msra.mxu0 0.0
    %193 = vmatprep.subr.mxu0 0.0
    %194 = vmatpush1.msra.mxu0 0.0
    %195 = vmatprep.subr.mxu0 0.0
    %196 = vmatpush1.msra.mxu0 0.0
    %197 = vmatprep.subr.mxu0 0.0
    %198 = vmatpush1.msra.mxu0 0.0
    %199 = vmatprep.subr.mxu0 0.0
    %200 = vmatpush1.msra.mxu0 0.0
    %201 = vmatprep.subr.mxu0 0.0
    %202 = vmatpush1.msra.mxu0 0.0
    %203 = vmatprep.subr.mxu0 0.0
    %204 = vmatpush1.msra.mxu0 0.0
    %205 = vmatprep.subr.mxu0 0.0
    %206 = vmatpush1.msra.mxu0 0.0
    %207 = vmatprep.subr.mxu0 0.0
    %208 = vmatpush1.msra.mxu0 0.0
    %209 = vmatprep.subr.mxu0 0.0
    %210 = vmatpush1.msra.mxu0 0.0
    %211 = vmatprep.subr.mxu0 0.0
    %212 = vmatpush1.msra.mxu0 0.0
    %213 = vmatprep.subr.mxu0 0.0
    %214 = vmatpush1.msra.mxu0 0.0
    %215 = vmatprep.subr.mxu0 0.0
    %216 = vmatpush1.msra.mxu0 0.0
    %217 = vmatprep.subr.mxu0 0.0
    %218 = vmatpush1.msra.mxu0 0.0
    %219 = vmatprep.subr.mxu0 0.0
    %220 = vmatpush1.msra.mxu0 0.0
    %221 = vmatprep.subr.mxu0 0.0
    %222 = vmatpush1.msra.mxu0 0.0
    %223 = vmatprep.mubr.f32.mxu0 0.0
    %224 = vmatmul.mubr.f32.gmra.mrb[0].mxu0 %v153
    %v225 = vpop.f32.mrb[0].mxu0
    %v226 = vadd.f32 0.0, %v225
    %v227 = vpop.f32.mrb[0].mxu0
    %228 = vdwg.mxu0
    %v229 = vpack.c.bf16 %v148, %v148
    %v230 = vld [vmem:[%s4] sm:$0xf]
    %v231 = vld [vmem:[%s4 + $0x4] sm:$0xf]
    %v232 = vld [vmem:[%s4 + $0x8] sm:$0xf]
    %v233 = vld [vmem:[%s4 + $0xc] sm:$0xf]
    %v234 = vld [vmem:[%s4 + $0x10] sm:$0xf]
    %v235 = vld [vmem:[%s4 + $0x14] sm:$0xf]
    %v236 = vld [vmem:[%s4 + $0x18] sm:$0xf]
    %v237 = vld [vmem:[%s4 + $0x1c] sm:$0xf]
    %v246 = vunpack.c.l.b16 %v230
    %v247 = vunpack.c.l.b16 %v231
    %v248 = vunpack.c.l.b16 %v232
    %v249 = vunpack.c.l.b16 %v233
    %v250 = vunpack.c.l.b16 %v234
    %v251 = vunpack.c.l.b16 %v235
    %v252 = vunpack.c.l.b16 %v236
    %v253 = vunpack.c.l.b16 %v237
    %v254 = vpack.c.b16 %v247, %v246
    %v255 = vpack.c.b16 %v249, %v248
    %v256 = vpack.c.b16 %v251, %v250
    %v257 = vpack.c.b16 %v253, %v252
    %vm262 = vcmask 523264
    %v264 = vsel %vm262, %v229, 0
    %266 = vmatprep.subr.bf16.mxu0 0
    %267 = vmatpush1.bf16.msra.mxu0 %v254
    %268 = vmatprep.subr.bf16.mxu0 0
    %269 = vmatpush1.bf16.msra.mxu0 %v255
    %270 = vmatprep.subr.bf16.mxu0 0
    %271 = vmatpush1.bf16.msra.mxu0 %v256
    %272 = vmatprep.subr.bf16.mxu0 0
    %273 = vmatpush1.bf16.msra.mxu0 %v257
    %274 = vmatprep.subr.bf16.mxu0 0
    %275 = vmatpush1.bf16.msra.mxu0 0
    %276 = vmatprep.subr.bf16.mxu0 0
    %277 = vmatpush1.bf16.msra.mxu0 0
    %278 = vmatprep.subr.bf16.mxu0 0
    %279 = vmatpush1.bf16.msra.mxu0 0
    %280 = vmatprep.subr.bf16.mxu0 0
    %281 = vmatpush1.bf16.msra.mxu0 0
    %282 = vmatprep.subr.bf16.mxu0 0
    %283 = vmatpush1.bf16.msra.mxu0 0
    %284 = vmatprep.subr.bf16.mxu0 0
    %285 = vmatpush1.bf16.msra.mxu0 0
    %286 = vmatprep.subr.bf16.mxu0 0
    %287 = vmatpush1.bf16.msra.mxu0 0
    %288 = vmatprep.subr.bf16.mxu0 0
    %289 = vmatpush1.bf16.msra.mxu0 0
    %290 = vmatprep.subr.bf16.mxu0 0
    %291 = vmatpush1.bf16.msra.mxu0 0
    %292 = vmatprep.subr.bf16.mxu0 0
    %293 = vmatpush1.bf16.msra.mxu0 0
    %294 = vmatprep.subr.bf16.mxu0 0
    %295 = vmatpush1.bf16.msra.mxu0 0
    %296 = vmatprep.subr.bf16.mxu0 0
    %297 = vmatpush1.bf16.msra.mxu0 0
    %298 = vmatprep.mubr.bf16.mxu0 0
    %299 = vmatmul.mubr.bf16.gmra.mrb[0].mxu0 %v264
    %v300 = vpop.f32.mrb[0].mxu0
    %v301 = vadd.f32 %v226, %v300
    %v302 = vpop.f32.mrb[0].mxu0
    %v303 = vpop.f32.mrb[0].mxu0
    %v304 = vpop.f32.mrb[0].mxu0
    %305 = vdwg.mxu0
    %v306 = vld [vmem:[#allocation7] sm:$0x1]
    %v308 = vlaneseq
    %v309 = vshrl.u32 %v308, 7
    %v310 = vsub.s32 0, %v309
    %v311 = vrot.slane %v306, %v310
    %v313 = vadd.f32 %v301, %v311
    %v314 = vmax.f32 %v313, 0.0
    %v315 = vpack.c.bf16 %v314, %v314
    %v316 = vld [vmem:[%s7] sm:$0xf]
    %v317 = vld [vmem:[%s7 + $0x4] sm:$0xf]
    %v318 = vld [vmem:[%s7 + $0x8] sm:$0xf]
    %v319 = vld [vmem:[%s7 + $0xc] sm:$0xf]
    %v320 = vld [vmem:[%s7 + $0x10] sm:$0xf]
    %v321 = vld [vmem:[%s7 + $0x14] sm:$0xf]
    %v322 = vld [vmem:[%s7 + $0x18] sm:$0xf]
    %v323 = vld [vmem:[%s7 + $0x1c] sm:$0xf]
    %v324 = vld [vmem:[%s8] sm:$0x1]
    %v326 = vlaneseq
    %v327 = vshrl.u32 %v326, 7
    %v328 = vsub.s32 0, %v327
    %v329 = vrot.slane %v324, %v328
    %v339 = vunpack.c.l.b16 %v316
    %v340 = vunpack.c.l.b16 %v317
    %v341 = vunpack.c.l.b16 %v318
    %v342 = vunpack.c.l.b16 %v319
    %v343 = vunpack.c.l.b16 %v320
    %v344 = vunpack.c.l.b16 %v321
    %v345 = vunpack.c.l.b16 %v322
    %v346 = vunpack.c.l.b16 %v323
    %v347 = vpack.c.b16 %v340, %v339
    %v348 = vpack.c.b16 %v342, %v341
    %v349 = vpack.c.b16 %v344, %v343
    %v350 = vpack.c.b16 %v346, %v345
    %v356 = vsel %vm262, %v315, 0
    %358 = vmatprep.subr.bf16.mxu0 0
    %359 = vmatpush1.bf16.msra.mxu0 %v347
    %360 = vmatprep.subr.bf16.mxu0 0
    %361 = vmatpush1.bf16.msra.mxu0 %v348
    %362 = vmatprep.subr.bf16.mxu0 0
    %363 = vmatpush1.bf16.msra.mxu0 %v349
    %364 = vmatprep.subr.bf16.mxu0 0
    %365 = vmatpush1.bf16.msra.mxu0 %v350
    %366 = vmatprep.subr.bf16.mxu0 0
    %367 = vmatpush1.bf16.msra.mxu0 0
    %368 = vmatprep.subr.bf16.mxu0 0
    %369 = vmatpush1.bf16.msra.mxu0 0
    %370 = vmatprep.subr.bf16.mxu0 0
    %371 = vmatpush1.bf16.msra.mxu0 0
    %372 = vmatprep.subr.bf16.mxu0 0
    %373 = vmatpush1.bf16.msra.mxu0 0
    %374 = vmatprep.subr.bf16.mxu0 0
    %375 = vmatpush1.bf16.msra.mxu0 0
    %376 = vmatprep.subr.bf16.mxu0 0
    %377 = vmatpush1.bf16.msra.mxu0 0
    %378 = vmatprep.subr.bf16.mxu0 0
    %379 = vmatpush1.bf16.msra.mxu0 0
    %380 = vmatprep.subr.bf16.mxu0 0
    %381 = vmatpush1.bf16.msra.mxu0 0
    %382 = vmatprep.subr.bf16.mxu0 0
    %383 = vmatpush1.bf16.msra.mxu0 0
    %384 = vmatprep.subr.bf16.mxu0 0
    %385 = vmatpush1.bf16.msra.mxu0 0
    %386 = vmatprep.subr.bf16.mxu0 0
    %387 = vmatpush1.bf16.msra.mxu0 0
    %388 = vmatprep.subr.bf16.mxu0 0
    %389 = vmatpush1.bf16.msra.mxu0 0
    %390 = vmatprep.mubr.bf16.mxu0 0
    %391 = vmatmul.mubr.bf16.gmra.mrb[0].mxu0 %v356
    %v392 = vpop.f32.mrb[0].mxu0
    %v393 = vadd.f32 %v329, %v392
    %v394 = vpop.f32.mrb[0].mxu0
    %v395 = vpop.f32.mrb[0].mxu0
    %v396 = vpop.f32.mrb[0].mxu0
    %397 = vdwg.mxu0
    %v398 = vmax.f32 %v393, 0.0
    %v399 = vpack.c.bf16 %v398, %v398
    %v400 = vld [vmem:[%s9] sm:$0xf]
    %v401 = vld [vmem:[%s9 + $0x4] sm:$0xf]
    %v402 = vld [vmem:[%s9 + $0x8] sm:$0xf]
    %v403 = vld [vmem:[%s9 + $0xc] sm:$0xf]
    %v404 = vld [vmem:[%s9 + $0x10] sm:$0xf]
    %v405 = vld [vmem:[%s9 + $0x14] sm:$0xf]
    %v406 = vld [vmem:[%s9 + $0x18] sm:$0xf]
    %v407 = vld [vmem:[%s9 + $0x1c] sm:$0xf]
    %v408 = vld [vmem:[%s10] sm:$0x1]
    %v410 = vlaneseq
    %v411 = vshrl.u32 %v410, 7
    %v412 = vsub.s32 0, %v411
    %v413 = vrot.slane %v408, %v412
    %v423 = vunpack.c.l.b16 %v400
    %v424 = vunpack.c.l.b16 %v401
    %v425 = vunpack.c.l.b16 %v402
    %v426 = vunpack.c.l.b16 %v403
    %v427 = vunpack.c.l.b16 %v404
    %v428 = vunpack.c.l.b16 %v405
    %v429 = vunpack.c.l.b16 %v406
    %v430 = vunpack.c.l.b16 %v407
    %v431 = vpack.c.b16 %v424, %v423
    %v432 = vpack.c.b16 %v426, %v425
    %v433 = vpack.c.b16 %v428, %v427
    %v434 = vpack.c.b16 %v430, %v429
    %v440 = vsel %vm262, %v399, 0
    %442 = vmatprep.subr.bf16.mxu0 0
    %443 = vmatpush1.bf16.msra.mxu0 %v431
    %444 = vmatprep.subr.bf16.mxu0 0
    %445 = vmatpush1.bf16.msra.mxu0 %v432
    %446 = vmatprep.subr.bf16.mxu0 0
    %447 = vmatpush1.bf16.msra.mxu0 %v433
    %448 = vmatprep.subr.bf16.mxu0 0
    %449 = vmatpush1.bf16.msra.mxu0 %v434
    %450 = vmatprep.subr.bf16.mxu0 0
    %451 = vmatpush1.bf16.msra.mxu0 0
    %452 = vmatprep.subr.bf16.mxu0 0
    %453 = vmatpush1.bf16.msra.mxu0 0
    %454 = vmatprep.subr.bf16.mxu0 0
    %455 = vmatpush1.bf16.msra.mxu0 0
    %456 = vmatprep.subr.bf16.mxu0 0
    %457 = vmatpush1.bf16.msra.mxu0 0
    %458 = vmatprep.subr.bf16.mxu0 0
    %459 = vmatpush1.bf16.msra.mxu0 0
    %460 = vmatprep.subr.bf16.mxu0 0
    %461 = vmatpush1.bf16.msra.mxu0 0
    %462 = vmatprep.subr.bf16.mxu0 0
    %463 = vmatpush1.bf16.msra.mxu0 0
    %464 = vmatprep.subr.bf16.mxu0 0
    %465 = vmatpush1.bf16.msra.mxu0 0
    %466 = vmatprep.subr.bf16.mxu0 0
    %467 = vmatpush1.bf16.msra.mxu0 0
    %468 = vmatprep.subr.bf16.mxu0 0
    %469 = vmatpush1.bf16.msra.mxu0 0
    %470 = vmatprep.subr.bf16.mxu0 0
    %471 = vmatpush1.bf16.msra.mxu0 0
    %472 = vmatprep.subr.bf16.mxu0 0
    %473 = vmatpush1.bf16.msra.mxu0 0
    %474 = vmatprep.mubr.bf16.mxu0 0
    %475 = vmatmul.mubr.bf16.gmra.mrb[0].mxu0 %v440
    %v476 = vpop.f32.mrb[0].mxu0
    %v477 = vadd.f32 %v413, %v476
    %v478 = vpop.f32.mrb[0].mxu0
    %v479 = vpop.f32.mrb[0].mxu0
    %v480 = vpop.f32.mrb[0].mxu0
    %481 = vdwg.mxu0
    %v482 = vtanh.pop %v477
    %vm483 = vcmask 31744
    %484 = vst.msk [vmem:[%s11] sm:$0xff] %vm483, %v482
    // Predicated region
    $region62: #{tpu_custom_call.1} parent=1 // pred_check
      _
    $region63: #{tpu_custom_call.1} parent=1 // pred_check_branch
      %486 = sbr.rel (0) target = $region65
    $region64: #{tpu_custom_call.1} parent=1 // pred_region
      _
    $region65: #{tpu_custom_call.1} parent=1 // pred_fallthru
      _
    // Predicated region
    $region66: #{tpu_custom_call.1} parent=1 // pred_check
      _
    $region67: #{tpu_custom_call.1} parent=1 // pred_check_branch
      %488 = sbr.rel (0) target = $region69
    $region68: #{tpu_custom_call.1} parent=1 // pred_region
      _
    $region69: #{tpu_custom_call.1} parent=1 // pred_fallthru
      _
    %489 = vsyncpa [#allocation3], 1
    %490 = vsyncpa [#allocation5], 1
    %491 = vsyncpa [#allocation8], 1

</llo_original>
